<compile_context>
chip_gen: v7x
topology: tpu7x:2x2x1
jax: 0.10.0
libtpu: 0.0.40
codegen_flags: <defaults>
</compile_context>

<pallas_src>
import functools

import jax
import jax.numpy as jnp
from jax import lax
from jax.experimental import pallas as pl
from jax.experimental.pallas import tpu as pltpu

_EPS = 1e-8  # matches torch.nn.functional.cosine_similarity default


# --------------------------------------------------------------------------
# Kernel
# --------------------------------------------------------------------------
def _infonce_kernel(lhs_ref, rhsT_ref, loss_ref, m_ref, l_ref, pos_ref,
                    *, n, tm, tn, f32_precision):
    i = pl.program_id(0)          # row-block index    ("parallel")
    j = pl.program_id(1)          # column-block index ("arbitrary", innermost)
    n_half = n // 2

    @pl.when(j == 0)
    def _init():
        m_ref[...] = jnp.full_like(m_ref, -jnp.inf)
        l_ref[...] = jnp.zeros_like(l_ref)
        pos_ref[...] = jnp.zeros_like(pos_ref)

    # Temperature-scaled cosine logits for this (TM, TN) tile on the MXU.
    # 1/temperature is already folded into the normalized LHS by the wrapper.
    logits = lax.dot_general(
        lhs_ref[...], rhsT_ref[...], (((1,), (0,)), ((), ())),
        precision=f32_precision,
        preferred_element_type=jnp.float32)                          # (TM, TN)

    row = lax.broadcasted_iota(jnp.int32, (tm, tn), 0) + i * tm      # global row
    col = lax.broadcasted_iota(jnp.int32, (tm, tn), 1) + j * tn      # global col

    # Positive logit: logits[r, (row + N/2) mod N]. Exactly one column matches
    # per row over the whole sweep, so a masked row-sum accumulates it (same
    # precision as the logits feeding the logsumexp).
    pos_col = row + n_half
    pos_col = jnp.where(pos_col >= n, pos_col - n, pos_col)
    pos_ref[...] += jnp.sum(jnp.where(col == pos_col, logits, 0.0),
                            axis=-1, keepdims=True)

    # Mask self-similarity (diagonal band of this tile only).
    logits = jnp.where(row == col, -jnp.inf, logits)

    # Online (flash-style) logsumexp over the column sweep.
    m_prev = m_ref[...]
    m_new = jnp.maximum(m_prev, jnp.max(logits, axis=-1, keepdims=True))
    alpha = jnp.exp(m_prev - m_new)                 # == 0 on the first step
    l_ref[...] = alpha * l_ref[...] + jnp.sum(jnp.exp(logits - m_new),
                                              axis=-1, keepdims=True)
    m_ref[...] = m_new

    @pl.when(j == pl.num_programs(1) - 1)
    def _finalize():
        # per-row loss = logsumexp - positive_logit
        loss_ref[...] = m_ref[...] + jnp.log(l_ref[...]) - pos_ref[...]


# --------------------------------------------------------------------------
# Tiling / VMEM heuristics
# --------------------------------------------------------------------------
def _tpu_vmem_capacity() -> int:
    try:
        info = pltpu.get_tpu_info()
        cap = int(getattr(info, "vmem_capacity_bytes", 0))
        if cap > 0:
            return cap
    except Exception:
        pass
    return 64 << 20  # conservative default (v7x per-core VMEM)


def _pick_tiles(n, vmem_cap_bytes, block_rows=None, block_cols=None):
    # Row tile: largest power-of-two divisor of N; cap 256 on 64 MiB parts
    # (v7x), allow 512 on 128 MiB parts (v5e/v6e).
    if block_rows is not None:
        tm = int(block_rows)
    else:
        tm_cap = 512 if vmem_cap_bytes >= (96 << 20) else 256
        tm = None
        for cand in (512, 256, 128, 64, 32, 16, 8):
            if cand <= tm_cap and cand <= n and n % cand == 0:
                tm = cand
                break
        if tm is None:
            # TODO(synk): pad awkward N up to a multiple of 256 and mask the
            # padded rows/cols instead of a single-row-block fallback.
            tm = n
    assert n % tm == 0 and (tm % 8 == 0 or tm == n), (n, tm)

    # Column tile for the flash-style online-LSE sweep (only needed at large N).
    if block_cols is not None:
        tn = int(block_cols)
    elif n <= 2048:
        tn = n
    else:
        tn = n  # TODO(synk): pad large N that is not a multiple of 128.
        for cand in (2048, 1024, 512, 256, 128):
            if n % cand == 0:
                tn = cand
                break
    assert n % tn == 0 and (tn % 128 == 0 or tn == n), (n, tn)
    return tm, tn


# --------------------------------------------------------------------------
# Wrapper
# --------------------------------------------------------------------------
def infonce_loss(x, temperature: float = 0.1, reduction: str = "mean",
                 use_bf16_matmul: bool = True,
                 block_rows=None, block_cols=None):
    """x: (2*B, D) -> InfoNCE loss (scalar for 'mean'/'sum', (2*B,) for 'none')."""
    n, d = x.shape
    assert n % 2 == 0, "input must stack two views: shape (2*B, D)"

    vmem_cap = _tpu_vmem_capacity()
    tm, tn = _pick_tiles(n, vmem_cap, block_rows, block_cols)

    # Hoisted preprocessing (one fused XLA pass): row-normalize, fold 1/T into
    # the LHS, cast to the MXU operand dtype, pre-transpose the RHS.
    xf = x.astype(jnp.float32)
    norm = jnp.sqrt(jnp.sum(xf * xf, axis=-1, keepdims=True))
    xn = xf / jnp.maximum(norm, _EPS)
    op_dtype = jnp.bfloat16 if use_bf16_matmul else jnp.float32
    lhs = (xn * (1.0 / float(temperature))).astype(op_dtype)      # (N, D)
    rhsT = xn.T.astype(op_dtype)                                  # (D, N)

    kernel = functools.partial(
        _infonce_kernel, n=n, tm=tm, tn=tn,
        f32_precision=None if use_bf16_matmul else lax.Precision.HIGHEST)

    num_row_blocks = n // tm
    num_col_blocks = n // tn

    itemsize = jnp.dtype(op_dtype).itemsize
    est_vmem = (2 * (tm * d + d * tn) * itemsize   # double-buffered input tiles
                + 6 * tm * tn * 4                  # logits / iota / exp temps
                + 5 * tm * 4                       # scratch + output block
                + (4 << 20))                       # headroom
    vmem_limit = int(min(max(est_vmem, 32 << 20), (vmem_cap * 7) // 8))

    loss_rows = pl.pallas_call(
        kernel,
        out_shape=jax.ShapeDtypeStruct((n, 1), jnp.float32),
        grid=(num_row_blocks, num_col_blocks),
        in_specs=[
            pl.BlockSpec((tm, d), lambda i, j: (i, 0)),   # LHS row tile (scaled)
            pl.BlockSpec((d, tn), lambda i, j: (0, j)),   # pre-transposed RHS
        ],
        out_specs=pl.BlockSpec((tm, 1), lambda i, j: (i, 0)),
        scratch_shapes=[
            pltpu.VMEM((tm, 1), jnp.float32),   # running max
            pltpu.VMEM((tm, 1), jnp.float32),   # running sum of exp
            pltpu.VMEM((tm, 1), jnp.float32),   # positive logit
        ],
        compiler_params=pltpu.CompilerParams(
            dimension_semantics=("parallel", "arbitrary"),
            vmem_limit_bytes=vmem_limit),
    )(lhs, rhsT)

    # TODO(synk): forward only -- no custom_vjp / backward kernel.
    if reduction == "mean":
        return jnp.mean(loss_rows)
    if reduction == "sum":
        return jnp.sum(loss_rows)
    return loss_rows[:, 0]


# --------------------------------------------------------------------------
# Pure-JAX reference (mirrors the PyTorch module)
# --------------------------------------------------------------------------
def _infonce_ref(x, temperature=0.1):
    n = x.shape[0]
    xn = x / jnp.maximum(jnp.linalg.norm(x, axis=-1, keepdims=True), _EPS)
    cos_sim = jnp.matmul(xn, xn.T, precision=lax.Precision.HIGHEST)
    self_mask = jnp.eye(n, dtype=bool)
    cos_sim = jnp.where(self_mask, -jnp.inf, cos_sim)
    pos_mask = jnp.roll(self_mask, shift=n // 2, axis=0)
    cos_sim = cos_sim / temperature
    pos = jnp.sum(jnp.where(pos_mask, cos_sim, 0.0), axis=-1)
    return (-pos + jax.scipy.special.logsumexp(cos_sim, axis=-1)).mean()


if __name__ == "__main__":
    key = jax.random.PRNGKey(0)
    k1, k2 = jax.random.split(key)

    # Shapes consistent with the module: x is (2*B, D).
    x_small = jax.random.normal(k1, (16, 128), dtype=jnp.float32)   # B=8,   D=128
    x_multi = jax.random.normal(k2, (256, 32), dtype=jnp.float32)   # B=128, D=32

    # f32 MXU path (tight tolerance vs. the pure-JAX reference).
    out_f32 = jax.block_until_ready(
        infonce_loss(x_small, temperature=0.1, use_bf16_matmul=False))
    ref = _infonce_ref(x_small, temperature=0.1)
    assert jnp.allclose(out_f32, ref, rtol=1e-3, atol=1e-3), (out_f32, ref)

    # Default bf16 MXU operands with f32 accumulation (looser tolerance).
    out_bf16 = jax.block_until_ready(infonce_loss(x_small, temperature=0.1))
    assert jnp.allclose(out_bf16, ref, rtol=5e-2, atol=5e-2), (out_bf16, ref)

    # Multiple row blocks + column-tiled online-logsumexp path.
    out_multi = jax.block_until_ready(
        infonce_loss(x_multi, temperature=0.1, use_bf16_matmul=False,
                     block_rows=64, block_cols=128))
    ref_multi = _infonce_ref(x_multi, temperature=0.1)
    assert jnp.allclose(out_multi, ref_multi, rtol=1e-3, atol=1e-3), (
        out_multi, ref_multi)

    # reduction="none" smoke check.
    rows = jax.block_until_ready(
        infonce_loss(x_small, temperature=0.1, reduction="none",
                     use_bf16_matmul=False))
    assert rows.shape == (16,)
    assert jnp.allclose(jnp.mean(rows), ref, rtol=1e-3, atol=1e-3)

    print("KERNEL_OK")
</pallas_src>

<mosaic_0001>
module attributes {stable_mosaic.version = 11 : i64} {
  func.func @_infonce_kernel(%arg0: i32, %arg1: i32, %arg2: memref<16x128xf32, #tpu.memory_space<vmem>>, %arg3: memref<128x16xf32, #tpu.memory_space<vmem>>, %arg4: memref<16x1xf32, #tpu.memory_space<vmem>>, %arg5: memref<16x1xf32, #tpu.memory_space<vmem>>, %arg6: memref<16x1xf32, #tpu.memory_space<vmem>>, %arg7: memref<16x1xf32, #tpu.memory_space<vmem>>) attributes {dimension_semantics = [#tpu.dimension_semantics<parallel>, #tpu.dimension_semantics<arbitrary>], iteration_bounds = array<i64: 1, 1>, scalar_prefetch = 0 : i64, scratch_operands = 3 : i64, tpu.core_type = #tpu.core_type<tc>, window_params = [{transform_indices = @transform_0, window_bounds = array<i64: 16, 128>}, {transform_indices = @transform_1, window_bounds = array<i64: 128, 16>}, {transform_indices = @transform_2, window_bounds = array<i64: 16, 1>}]} {
    %c0_i32 = arith.constant 0 : i32
    %0 = arith.cmpi eq, %arg1, %c0_i32 : i32
    %1 = arith.extui %0 : i1 to i32
    %c0_i32_0 = arith.constant 0 : i32
    %2 = arith.cmpi ne, %1, %c0_i32_0 : i32
    scf.if %2 {
      %cst_26 = arith.constant 0xFF800000 : f32
      %51 = vector.broadcast %cst_26 : f32 to vector<16x1xf32>
      %c0_27 = arith.constant 0 : index
      %c0_28 = arith.constant 0 : index
      %52 = vector.load %arg5[%c0_27, %c0_28] : memref<16x1xf32, #tpu.memory_space<vmem>>, vector<16x1xf32>
      tpu.vector_store %arg5[%c0_27, %c0_28], %51 {strides = array<i32>} : memref<16x1xf32, #tpu.memory_space<vmem>>, vector<16x1xf32>,
      %cst_29 = arith.constant 0.000000e+00 : f32
      %53 = vector.broadcast %cst_29 : f32 to vector<16x1xf32>
      %c0_30 = arith.constant 0 : index
      %c0_31 = arith.constant 0 : index
      %54 = vector.load %arg6[%c0_30, %c0_31] : memref<16x1xf32, #tpu.memory_space<vmem>>, vector<16x1xf32>
      tpu.vector_store %arg6[%c0_30, %c0_31], %53 {strides = array<i32>} : memref<16x1xf32, #tpu.memory_space<vmem>>, vector<16x1xf32>,
      %cst_32 = arith.constant 0.000000e+00 : f32
      %55 = vector.broadcast %cst_32 : f32 to vector<16x1xf32>
      %c0_33 = arith.constant 0 : index
      %c0_34 = arith.constant 0 : index
      %56 = vector.load %arg7[%c0_33, %c0_34] : memref<16x1xf32, #tpu.memory_space<vmem>>, vector<16x1xf32>
      tpu.vector_store %arg7[%c0_33, %c0_34], %55 {strides = array<i32>} : memref<16x1xf32, #tpu.memory_space<vmem>>, vector<16x1xf32>,
    } else {
    }
    %c0 = arith.constant 0 : index
    %c0_1 = arith.constant 0 : index
    %3 = vector.load %arg2[%c0, %c0_1] : memref<16x128xf32, #tpu.memory_space<vmem>>, vector<16x128xf32>
    %c0_2 = arith.constant 0 : index
    %c0_3 = arith.constant 0 : index
    %4 = vector.load %arg3[%c0_2, %c0_3] : memref<128x16xf32, #tpu.memory_space<vmem>>, vector<128x16xf32>
    %cst = arith.constant dense<0.000000e+00> : vector<16x16xf32>
    %5 = tpu.matmul %3, %4, %cst {dimension_numbers = #tpu.dot_dimension_numbers<[1], [0], [0], [1], [0, 0, 1, 1], [], []>, precision = #tpu.contract_precision<fp32>} : vector<16x128xf32>, vector<128x16xf32>, vector<16x16xf32> -> vector<16x16xf32>
    %6 = tpu.iota {dimensions = array<i32: 0>} : vector<16x16xi32>
    %c16_i32 = arith.constant 16 : i32
    %7 = arith.muli %arg0, %c16_i32 : i32
    %8 = vector.broadcast %7 : i32 to vector<16x16xi32>
    %9 = arith.addi %6, %8 : vector<16x16xi32>
    %10 = tpu.iota {dimensions = array<i32: 1>} : vector<16x16xi32>
    %c16_i32_4 = arith.constant 16 : i32
    %11 = arith.muli %arg1, %c16_i32_4 : i32
    %12 = vector.broadcast %11 : i32 to vector<16x16xi32>
    %13 = arith.addi %10, %12 : vector<16x16xi32>
    %c8_i32 = arith.constant 8 : i32
    %14 = vector.broadcast %c8_i32 : i32 to vector<16x16xi32>
    %15 = arith.addi %9, %14 : vector<16x16xi32>
    %c16_i32_5 = arith.constant 16 : i32
    %16 = vector.broadcast %c16_i32_5 : i32 to vector<16x16xi32>
    %17 = arith.cmpi sge, %15, %16 : vector<16x16xi32>
    %c16_i32_6 = arith.constant 16 : i32
    %18 = vector.broadcast %c16_i32_6 : i32 to vector<16x16xi32>
    %19 = arith.subi %15, %18 : vector<16x16xi32>
    %20 = arith.select %17, %19, %15 : vector<16x16xi1>, vector<16x16xi32>
    %c0_7 = arith.constant 0 : index
    %c0_8 = arith.constant 0 : index
    %21 = vector.load %arg7[%c0_7, %c0_8] : memref<16x1xf32, #tpu.memory_space<vmem>>, vector<16x1xf32>
    %22 = arith.cmpi eq, %13, %20 : vector<16x16xi32>
    %cst_9 = arith.constant 0.000000e+00 : f32
    %23 = vector.broadcast %cst_9 : f32 to vector<16x16xf32>
    %24 = arith.select %22, %5, %23 : vector<16x16xi1>, vector<16x16xf32>
    %cst_10 = arith.constant dense<0.000000e+00> : vector<16xf32>
    %25 = vector.multi_reduction <add>, %24, %cst_10 [1] : vector<16x16xf32> to vector<16xf32>
    %26 = vector.shape_cast %25 : vector<16xf32> to vector<16x1xf32>
    %27 = arith.addf %21, %26 : vector<16x1xf32>
    %c0_11 = arith.constant 0 : index
    %c0_12 = arith.constant 0 : index
    %28 = vector.load %arg7[%c0_11, %c0_12] : memref<16x1xf32, #tpu.memory_space<vmem>>, vector<16x1xf32>
    tpu.vector_store %arg7[%c0_11, %c0_12], %27 {strides = array<i32>} : memref<16x1xf32, #tpu.memory_space<vmem>>, vector<16x1xf32>,
    %29 = arith.cmpi eq, %9, %13 : vector<16x16xi32>
    %cst_13 = arith.constant 0xFF800000 : f32
    %30 = vector.broadcast %cst_13 : f32 to vector<16x16xf32>
    %31 = arith.select %29, %30, %5 : vector<16x16xi1>, vector<16x16xf32>
    %c0_14 = arith.constant 0 : index
    %c0_15 = arith.constant 0 : index
    %32 = vector.load %arg5[%c0_14, %c0_15] : memref<16x1xf32, #tpu.memory_space<vmem>>, vector<16x1xf32>
    %cst_16 = arith.constant dense<0xFF800000> : vector<16xf32>
    %33 = vector.multi_reduction <maximumf>, %31, %cst_16 [1] : vector<16x16xf32> to vector<16xf32>
    %34 = vector.shape_cast %33 : vector<16xf32> to vector<16x1xf32>
    %35 = arith.maximumf %32, %34 : vector<16x1xf32>
    %36 = arith.subf %32, %35 : vector<16x1xf32>
    %37 = math.exp %36 : vector<16x1xf32>
    %c0_17 = arith.constant 0 : index
    %c0_18 = arith.constant 0 : index
    %38 = vector.load %arg6[%c0_17, %c0_18] : memref<16x1xf32, #tpu.memory_space<vmem>>, vector<16x1xf32>
    %39 = arith.mulf %37, %38 : vector<16x1xf32>
    %40 = vector.broadcast %35 : vector<16x1xf32> to vector<16x16xf32>
    %41 = arith.subf %31, %40 : vector<16x16xf32>
    %42 = math.exp %41 : vector<16x16xf32>
    %cst_19 = arith.constant dense<0.000000e+00> : vector<16xf32>
    %43 = vector.multi_reduction <add>, %42, %cst_19 [1] : vector<16x16xf32> to vector<16xf32>
    %44 = vector.shape_cast %43 : vector<16xf32> to vector<16x1xf32>
    %45 = arith.addf %39, %44 : vector<16x1xf32>
    %c0_20 = arith.constant 0 : index
    %c0_21 = arith.constant 0 : index
    %46 = vector.load %arg6[%c0_20, %c0_21] : memref<16x1xf32, #tpu.memory_space<vmem>>, vector<16x1xf32>
    tpu.vector_store %arg6[%c0_20, %c0_21], %45 {strides = array<i32>} : memref<16x1xf32, #tpu.memory_space<vmem>>, vector<16x1xf32>,
    %c0_22 = arith.constant 0 : index
    %c0_23 = arith.constant 0 : index
    %47 = vector.load %arg5[%c0_22, %c0_23] : memref<16x1xf32, #tpu.memory_space<vmem>>, vector<16x1xf32>
    tpu.vector_store %arg5[%c0_22, %c0_23], %35 {strides = array<i32>} : memref<16x1xf32, #tpu.memory_space<vmem>>, vector<16x1xf32>,
    %c0_i32_24 = arith.constant 0 : i32
    %48 = arith.cmpi eq, %arg1, %c0_i32_24 : i32
    %49 = arith.extui %48 : i1 to i32
    %c0_i32_25 = arith.constant 0 : i32
    %50 = arith.cmpi ne, %49, %c0_i32_25 : i32
    scf.if %50 {
      %c0_26 = arith.constant 0 : index
      %c0_27 = arith.constant 0 : index
      %51 = vector.load %arg5[%c0_26, %c0_27] : memref<16x1xf32, #tpu.memory_space<vmem>>, vector<16x1xf32>
      %c0_28 = arith.constant 0 : index
      %c0_29 = arith.constant 0 : index
      %52 = vector.load %arg6[%c0_28, %c0_29] : memref<16x1xf32, #tpu.memory_space<vmem>>, vector<16x1xf32>
      %53 = math.log %52 : vector<16x1xf32>
      %54 = arith.addf %51, %53 : vector<16x1xf32>
      %c0_30 = arith.constant 0 : index
      %c0_31 = arith.constant 0 : index
      %55 = vector.load %arg7[%c0_30, %c0_31] : memref<16x1xf32, #tpu.memory_space<vmem>>, vector<16x1xf32>
      %56 = arith.subf %54, %55 : vector<16x1xf32>
      %c0_32 = arith.constant 0 : index
      %c0_33 = arith.constant 0 : index
      %57 = vector.load %arg4[%c0_32, %c0_33] : memref<16x1xf32, #tpu.memory_space<vmem>>, vector<16x1xf32>
      tpu.vector_store %arg4[%c0_32, %c0_33], %56 {strides = array<i32>} : memref<16x1xf32, #tpu.memory_space<vmem>>, vector<16x1xf32>,
    } else {
    }
    return
  }
  func.func @transform_0(%arg0: i32, %arg1: i32) -> (i32, i32) {
    %c0_i32 = arith.constant 0 : i32
    %c0_i32_0 = arith.constant 0 : i32
    return %arg0, %c0_i32 : i32, i32
  }
  func.func @transform_1(%arg0: i32, %arg1: i32) -> (i32, i32) {
    %c0_i32 = arith.constant 0 : i32
    %c0_i32_0 = arith.constant 0 : i32
    return %c0_i32, %arg1 : i32, i32
  }
  func.func @transform_2(%arg0: i32, %arg1: i32) -> (i32, i32) {
    %c0_i32 = arith.constant 0 : i32
    %c0_i32_0 = arith.constant 0 : i32
    return %arg0, %c0_i32 : i32, i32
  }
}

</mosaic_0001>

<llo_original>
// kernel: tpu_custom_call.1
$region0: #{tpu_custom_call.1}
  #allocation0 [shape = 'u32[]', space=smem, size = 0x4, offset = 0x4, fixed_abs, tag = 'smem constant byte address 0x4 - core index']
  #allocation1 [shape = 'u32[144,128]{1,0:T(1,128)}', space=vmem, size = 0x12000, scoped, tag = 'internal scratch']
  #allocation2 [shape = 'f32[16,1]{1,0:T(8,128)}', space=vmem, size = 0x2000, scoped, tag = 'scratch operand']
  #allocation3 [shape = 'f32[16,1]{1,0:T(8,128)}', space=vmem, size = 0x2000, scoped, tag = 'scratch operand']
  #allocation4 [shape = 'f32[16,1]{1,0:T(8,128)}', space=vmem, size = 0x2000, scoped, tag = 'scratch operand']
  %s0 = inlined_call_operand.vmem [shape: f32[16,128], index: 0, kind: input, shape index: {}]
  %s1 = inlined_call_operand.vmem [shape: f32[128,16], index: 1, kind: input, shape index: {}]
  %s2 = inlined_call_operand.vmem [shape: f32[16,1], index: 2, kind: output, shape index: {}]
  %s3 = sld [smem:[#allocation0]]
  $region26: #{tpu_custom_call.1} parent=0
    _
  %s5 = ssub.s32 1, %s3
  %s6 = scalar_select 0, %s5, %s3
  // Predicated region
  $region2: #{tpu_custom_call.1} parent=0 // pred_check
    _
  $region3: #{tpu_custom_call.1} parent=0 // pred_check_branch
    %8 = sbr.rel (0) target = $region5
  $region4: #{tpu_custom_call.1} parent=0 // pred_region
    _
  $region5: #{tpu_custom_call.1} parent=0 // pred_fallthru
    _
  // Predicated region
  $region6: #{tpu_custom_call.1} parent=0 // pred_check
    _
  $region7: #{tpu_custom_call.1} parent=0 // pred_check_branch
    %10 = sbr.rel (0) target = $region9
  $region8: #{tpu_custom_call.1} parent=0 // pred_region
    _
  $region9: #{tpu_custom_call.1} parent=0 // pred_fallthru
    _
  %p11 = scmp.eq.s32.totalorder 0, 0
  // Predicated region
  $region10: #{tpu_custom_call.1} parent=0 // pred_check
    %p12 = pneg %p11
  $region11: #{tpu_custom_call.1} parent=0 // pred_check_branch
    %14 = sbr.rel (%p12) target = $region13
  $region12: #{tpu_custom_call.1} parent=0 // pred_region
    %vm15 = vcmask 7168
    %16 = vst.msk [vmem:[#allocation2] sm:$0xff] %vm15, -inf
    %17 = vst.msk [vmem:[#allocation2 + $0x8] sm:$0xff] %vm15, -inf
    %18 = vst.msk [vmem:[#allocation3] sm:$0xff] %vm15, 0.0
    %19 = vst.msk [vmem:[#allocation3 + $0x8] sm:$0xff] %vm15, 0.0
    %20 = vst.msk [vmem:[#allocation4] sm:$0xff] %vm15, 0.0
    %21 = vst.msk [vmem:[#allocation4 + $0x8] sm:$0xff] %vm15, 0.0
  $region13: #{tpu_custom_call.1} parent=0 // pred_fallthru
    _
  %v22 = vld [vmem:[%s0] sm:$0xff]
  %v23 = vld [vmem:[%s0 + $0x8] sm:$0xff]
  %v24 = vld [vmem:[%s1] sm:$0xff]
  %v25 = vld [vmem:[%s1 + $0x8] sm:$0xff]
  %v26 = vld [vmem:[%s1 + $0x10] sm:$0xff]
  %v27 = vld [vmem:[%s1 + $0x18] sm:$0xff]
  %v28 = vld [vmem:[%s1 + $0x20] sm:$0xff]
  %v29 = vld [vmem:[%s1 + $0x28] sm:$0xff]
  %v30 = vld [vmem:[%s1 + $0x30] sm:$0xff]
  %v31 = vld [vmem:[%s1 + $0x38] sm:$0xff]
  %v32 = vld [vmem:[%s1 + $0x40] sm:$0xff]
  %v33 = vld [vmem:[%s1 + $0x48] sm:$0xff]
  %v34 = vld [vmem:[%s1 + $0x50] sm:$0xff]
  %v35 = vld [vmem:[%s1 + $0x58] sm:$0xff]
  %v36 = vld [vmem:[%s1 + $0x60] sm:$0xff]
  %v37 = vld [vmem:[%s1 + $0x68] sm:$0xff]
  %v38 = vld [vmem:[%s1 + $0x70] sm:$0xff]
  %v39 = vld [vmem:[%s1 + $0x78] sm:$0xff]
  %40 = vmatprep.subr.mxu0 0.0
  %v41 = vand.u32 %v24, 4294901760
  %42 = vmatpush1.msra.mxu0 %v41
  %43 = vmatprep.subr.mxu0 0.0
  %v44 = vand.u32 %v25, 4294901760
  %45 = vmatpush1.msra.mxu0 %v44
  %46 = vmatprep.subr.mxu0 0.0
  %v47 = vand.u32 %v26, 4294901760
  %48 = vmatpush1.msra.mxu0 %v47
  %49 = vmatprep.subr.mxu0 0.0
  %v50 = vand.u32 %v27, 4294901760
  %51 = vmatpush1.msra.mxu0 %v50
  %52 = vmatprep.subr.mxu0 0.0
  %v53 = vand.u32 %v28, 4294901760
  %54 = vmatpush1.msra.mxu0 %v53
  %55 = vmatprep.subr.mxu0 0.0
  %v56 = vand.u32 %v29, 4294901760
  %57 = vmatpush1.msra.mxu0 %v56
  %58 = vmatprep.subr.mxu0 0.0
  %v59 = vand.u32 %v30, 4294901760
  %60 = vmatpush1.msra.mxu0 %v59
  %61 = vmatprep.subr.mxu0 0.0
  %v62 = vand.u32 %v31, 4294901760
  %63 = vmatpush1.msra.mxu0 %v62
  %64 = vmatprep.subr.mxu0 0.0
  %v65 = vand.u32 %v32, 4294901760
  %66 = vmatpush1.msra.mxu0 %v65
  %67 = vmatprep.subr.mxu0 0.0
  %v68 = vand.u32 %v33, 4294901760
  %69 = vmatpush1.msra.mxu0 %v68
  %70 = vmatprep.subr.mxu0 0.0
  %v71 = vand.u32 %v34, 4294901760
  %72 = vmatpush1.msra.mxu0 %v71
  %73 = vmatprep.subr.mxu0 0.0
  %v74 = vand.u32 %v35, 4294901760
  %75 = vmatpush1.msra.mxu0 %v74
  %76 = vmatprep.subr.mxu0 0.0
  %v77 = vand.u32 %v36, 4294901760
  %78 = vmatpush1.msra.mxu0 %v77
  %79 = vmatprep.subr.mxu0 0.0
  %v80 = vand.u32 %v37, 4294901760
  %81 = vmatpush1.msra.mxu0 %v80
  %82 = vmatprep.subr.mxu0 0.0
  %v83 = vand.u32 %v38, 4294901760
  %84 = vmatpush1.msra.mxu0 %v83
  %85 = vmatprep.subr.mxu0 0.0
  %v86 = vand.u32 %v39, 4294901760
  %87 = vmatpush1.msra.mxu0 %v86
  %88 = vmatprep.subr.mxu0 0.0
  %89 = vmatpush1.msra.mxu0 0.0
  %90 = vmatprep.subr.mxu0 0.0
  %91 = vmatpush1.msra.mxu0 0.0
  %92 = vmatprep.subr.mxu0 0.0
  %93 = vmatpush1.msra.mxu0 0.0
  %94 = vmatprep.subr.mxu0 0.0
  %95 = vmatpush1.msra.mxu0 0.0
  %96 = vmatprep.subr.mxu0 0.0
  %97 = vmatpush1.msra.mxu0 0.0
  %98 = vmatprep.subr.mxu0 0.0
  %99 = vmatpush1.msra.mxu0 0.0
  %100 = vmatprep.subr.mxu0 0.0
  %101 = vmatpush1.msra.mxu0 0.0
  %102 = vmatprep.subr.mxu0 0.0
  %103 = vmatpush1.msra.mxu0 0.0
  %104 = vmatprep.subr.mxu0 0.0
  %105 = vmatpush1.msra.mxu0 0.0
  %106 = vmatprep.subr.mxu0 0.0
  %107 = vmatpush1.msra.mxu0 0.0
  %108 = vmatprep.subr.mxu0 0.0
  %109 = vmatpush1.msra.mxu0 0.0
  %110 = vmatprep.subr.mxu0 0.0
  %111 = vmatpush1.msra.mxu0 0.0
  %112 = vmatprep.subr.mxu0 0.0
  %113 = vmatpush1.msra.mxu0 0.0
  %114 = vmatprep.subr.mxu0 0.0
  %115 = vmatpush1.msra.mxu0 0.0
  %116 = vmatprep.subr.mxu0 0.0
  %117 = vmatpush1.msra.mxu0 0.0
  %118 = vmatprep.subr.mxu0 0.0
  %119 = vmatpush1.msra.mxu0 0.0
  %120 = vmatprep.mubr.f32.mxu0 0.0
  %v121 = vand.u32 %v22, 4294901760
  %v122 = vsub.f32 %v22, %v121
  %v123 = vand.u32 %v122, 4294901760
  %v124 = vsub.f32 %v122, %v123
  %v125 = vand.u32 %v124, 4294901760
  %126 = vmatmul.mubr.f32.gmra.mrb[0].mxu0 %v125
  %v127 = vpop.f32.mrb[0].mxu0
  %v128 = vadd.f32 0.0, %v127
  %v129 = vpop.f32.mrb[0].mxu0
  %130 = vmatprep.mubr.f32.mxu0 0.0
  %v131 = vand.u32 %v23, 4294901760
  %v132 = vsub.f32 %v23, %v131
  %v133 = vand.u32 %v132, 4294901760
  %v134 = vsub.f32 %v132, %v133
  %v135 = vand.u32 %v134, 4294901760
  %136 = vmatmul.mubr.f32.gmra.mrb[0].mxu0 %v135
  %v137 = vpop.f32.mrb[0].mxu0
  %v138 = vadd.f32 0.0, %v137
  %v139 = vpop.f32.mrb[0].mxu0
  %140 = vdwg.mxu0
  %141 = vmatprep.subr.mxu0 0.0
  %v142 = vand.u32 %v24, 4294901760
  %v143 = vsub.f32 %v24, %v142
  %v144 = vand.u32 %v143, 4294901760
  %v145 = vsub.f32 %v143, %v144
  %v146 = vand.u32 %v145, 4294901760
  %147 = vmatpush1.msra.mxu0 %v146
  %148 = vmatprep.subr.mxu0 0.0
  %v149 = vand.u32 %v25, 4294901760
  %v150 = vsub.f32 %v25, %v149
  %v151 = vand.u32 %v150, 4294901760
  %v152 = vsub.f32 %v150, %v151
  %v153 = vand.u32 %v152, 4294901760
  %154 = vmatpush1.msra.mxu0 %v153
  %155 = vmatprep.subr.mxu0 0.0
  %v156 = vand.u32 %v26, 4294901760
  %v157 = vsub.f32 %v26, %v156
  %v158 = vand.u32 %v157, 4294901760
  %v159 = vsub.f32 %v157, %v158
  %v160 = vand.u32 %v159, 4294901760
  %161 = vmatpush1.msra.mxu0 %v160
  %162 = vmatprep.subr.mxu0 0.0
  %v163 = vand.u32 %v27, 4294901760
  %v164 = vsub.f32 %v27, %v163
  %v165 = vand.u32 %v164, 4294901760
  %v166 = vsub.f32 %v164, %v165
  %v167 = vand.u32 %v166, 4294901760
  %168 = vmatpush1.msra.mxu0 %v167
  %169 = vmatprep.subr.mxu0 0.0
  %v170 = vand.u32 %v28, 4294901760
  %v171 = vsub.f32 %v28, %v170
  %v172 = vand.u32 %v171, 4294901760
  %v173 = vsub.f32 %v171, %v172
  %v174 = vand.u32 %v173, 4294901760
  %175 = vmatpush1.msra.mxu0 %v174
  %176 = vmatprep.subr.mxu0 0.0
  %v177 = vand.u32 %v29, 4294901760
  %v178 = vsub.f32 %v29, %v177
  %v179 = vand.u32 %v178, 4294901760
  %v180 = vsub.f32 %v178, %v179
  %v181 = vand.u32 %v180, 4294901760
  %182 = vmatpush1.msra.mxu0 %v181
  %183 = vmatprep.subr.mxu0 0.0
  %v184 = vand.u32 %v30, 4294901760
  %v185 = vsub.f32 %v30, %v184
  %v186 = vand.u32 %v185, 4294901760
  %v187 = vsub.f32 %v185, %v186
  %v188 = vand.u32 %v187, 4294901760
  %189 = vmatpush1.msra.mxu0 %v188
  %190 = vmatprep.subr.mxu0 0.0
  %v191 = vand.u32 %v31, 4294901760
  %v192 = vsub.f32 %v31, %v191
  %v193 = vand.u32 %v192, 4294901760
  %v194 = vsub.f32 %v192, %v193
  %v195 = vand.u32 %v194, 4294901760
  %196 = vmatpush1.msra.mxu0 %v195
  %197 = vmatprep.subr.mxu0 0.0
  %v198 = vand.u32 %v32, 4294901760
  %v199 = vsub.f32 %v32, %v198
  %v200 = vand.u32 %v199, 4294901760
  %v201 = vsub.f32 %v199, %v200
  %v202 = vand.u32 %v201, 4294901760
  %203 = vmatpush1.msra.mxu0 %v202
  %204 = vmatprep.subr.mxu0 0.0
  %v205 = vand.u32 %v33, 4294901760
  %v206 = vsub.f32 %v33, %v205
  %v207 = vand.u32 %v206, 4294901760
  %v208 = vsub.f32 %v206, %v207
  %v209 = vand.u32 %v208, 4294901760
  %210 = vmatpush1.msra.mxu0 %v209
  %211 = vmatprep.subr.mxu0 0.0
  %v212 = vand.u32 %v34, 4294901760
  %v213 = vsub.f32 %v34, %v212
  %v214 = vand.u32 %v213, 4294901760
  %v215 = vsub.f32 %v213, %v214
  %v216 = vand.u32 %v215, 4294901760
  %217 = vmatpush1.msra.mxu0 %v216
  %218 = vmatprep.subr.mxu0 0.0
  %v219 = vand.u32 %v35, 4294901760
  %v220 = vsub.f32 %v35, %v219
  %v221 = vand.u32 %v220, 4294901760
  %v222 = vsub.f32 %v220, %v221
  %v223 = vand.u32 %v222, 4294901760
  %224 = vmatpush1.msra.mxu0 %v223
  %225 = vmatprep.subr.mxu0 0.0
  %v226 = vand.u32 %v36, 4294901760
  %v227 = vsub.f32 %v36, %v226
  %v228 = vand.u32 %v227, 4294901760
  %v229 = vsub.f32 %v227, %v228
  %v230 = vand.u32 %v229, 4294901760
  %231 = vmatpush1.msra.mxu0 %v230
  %232 = vmatprep.subr.mxu0 0.0
  %v233 = vand.u32 %v37, 4294901760
  %v234 = vsub.f32 %v37, %v233
  %v235 = vand.u32 %v234, 4294901760
  %v236 = vsub.f32 %v234, %v235
  %v237 = vand.u32 %v236, 4294901760
  %238 = vmatpush1.msra.mxu0 %v237
  %239 = vmatprep.subr.mxu0 0.0
  %v240 = vand.u32 %v38, 4294901760
  %v241 = vsub.f32 %v38, %v240
  %v242 = vand.u32 %v241, 4294901760
  %v243 = vsub.f32 %v241, %v242
  %v244 = vand.u32 %v243, 4294901760
  %245 = vmatpush1.msra.mxu0 %v244
  %246 = vmatprep.subr.mxu0 0.0
  %v247 = vand.u32 %v39, 4294901760
  %v248 = vsub.f32 %v39, %v247
  %v249 = vand.u32 %v248, 4294901760
  %v250 = vsub.f32 %v248, %v249
  %v251 = vand.u32 %v250, 4294901760
  %252 = vmatpush1.msra.mxu0 %v251
  %253 = vmatprep.subr.mxu0 0.0
  %254 = vmatpush1.msra.mxu0 0.0
  %255 = vmatprep.subr.mxu0 0.0
  %256 = vmatpush1.msra.mxu0 0.0
  %257 = vmatprep.subr.mxu0 0.0
  %258 = vmatpush1.msra.mxu0 0.0
  %259 = vmatprep.subr.mxu0 0.0
  %260 = vmatpush1.msra.mxu0 0.0
  %261 = vmatprep.subr.mxu0 0.0
  %262 = vmatpush1.msra.mxu0 0.0
  %263 = vmatprep.subr.mxu0 0.0
  %264 = vmatpush1.msra.mxu0 0.0
  %265 = vmatprep.subr.mxu0 0.0
  %266 = vmatpush1.msra.mxu0 0.0
  %267 = vmatprep.subr.mxu0 0.0
  %268 = vmatpush1.msra.mxu0 0.0
  %269 = vmatprep.subr.mxu0 0.0
  %270 = vmatpush1.msra.mxu0 0.0
  %271 = vmatprep.subr.mxu0 0.0
  %272 = vmatpush1.msra.mxu0 0.0
  %273 = vmatprep.subr.mxu0 0.0
  %274 = vmatpush1.msra.mxu0 0.0
  %275 = vmatprep.subr.mxu0 0.0
  %276 = vmatpush1.msra.mxu0 0.0
  %277 = vmatprep.subr.mxu0 0.0
  %278 = vmatpush1.msra.mxu0 0.0
  %279 = vmatprep.subr.mxu0 0.0
  %280 = vmatpush1.msra.mxu0 0.0
  %281 = vmatprep.subr.mxu0 0.0
  %282 = vmatpush1.msra.mxu0 0.0
  %283 = vmatprep.subr.mxu0 0.0
  %284 = vmatpush1.msra.mxu0 0.0
  %285 = vmatprep.mubr.f32.mxu0 0.0
  %v286 = vand.u32 %v22, 4294901760
  %287 = vmatmul.mubr.f32.gmra.mrb[0].mxu0 %v286
  %v288 = vpop.f32.mrb[0].mxu0
  %v289 = vadd.f32 %v128, %v288
  %v290 = vpop.f32.mrb[0].mxu0
  %291 = vmatprep.mubr.f32.mxu0 0.0
  %v292 = vand.u32 %v23, 4294901760
  %293 = vmatmul.mubr.f32.gmra.mrb[0].mxu0 %v292
  %v294 = vpop.f32.mrb[0].mxu0
  %v295 = vadd.f32 %v138, %v294
  %v296 = vpop.f32.mrb[0].mxu0
  %297 = vdwg.mxu0
  %298 = vmatprep.subr.mxu0 0.0
  %v299 = vand.u32 %v24, 4294901760
  %v300 = vsub.f32 %v24, %v299
  %301 = vmatpush1.msra.mxu0 %v300
  %302 = vmatprep.subr.mxu0 0.0
  %v303 = vand.u32 %v25, 4294901760
  %v304 = vsub.f32 %v25, %v303
  %305 = vmatpush1.msra.mxu0 %v304
  %306 = vmatprep.subr.mxu0 0.0
  %v307 = vand.u32 %v26, 4294901760
  %v308 = vsub.f32 %v26, %v307
  %309 = vmatpush1.msra.mxu0 %v308
  %310 = vmatprep.subr.mxu0 0.0
  %v311 = vand.u32 %v27, 4294901760
  %v312 = vsub.f32 %v27, %v311
  %313 = vmatpush1.msra.mxu0 %v312
  %314 = vmatprep.subr.mxu0 0.0
  %v315 = vand.u32 %v28, 4294901760
  %v316 = vsub.f32 %v28, %v315
  %317 = vmatpush1.msra.mxu0 %v316
  %318 = vmatprep.subr.mxu0 0.0
  %v319 = vand.u32 %v29, 4294901760
  %v320 = vsub.f32 %v29, %v319
  %321 = vmatpush1.msra.mxu0 %v320
  %322 = vmatprep.subr.mxu0 0.0
  %v323 = vand.u32 %v30, 4294901760
  %v324 = vsub.f32 %v30, %v323
  %325 = vmatpush1.msra.mxu0 %v324
  %326 = vmatprep.subr.mxu0 0.0
  %v327 = vand.u32 %v31, 4294901760
  %v328 = vsub.f32 %v31, %v327
  %329 = vmatpush1.msra.mxu0 %v328
  %330 = vmatprep.subr.mxu0 0.0
  %v331 = vand.u32 %v32, 4294901760
  %v332 = vsub.f32 %v32, %v331
  %333 = vmatpush1.msra.mxu0 %v332
  %334 = vmatprep.subr.mxu0 0.0
  %v335 = vand.u32 %v33, 4294901760
  %v336 = vsub.f32 %v33, %v335
  %337 = vmatpush1.msra.mxu0 %v336
  %338 = vmatprep.subr.mxu0 0.0
  %v339 = vand.u32 %v34, 4294901760
  %v340 = vsub.f32 %v34, %v339
  %341 = vmatpush1.msra.mxu0 %v340
  %342 = vmatprep.subr.mxu0 0.0
  %v343 = vand.u32 %v35, 4294901760
  %v344 = vsub.f32 %v35, %v343
  %345 = vmatpush1.msra.mxu0 %v344
  %346 = vmatprep.subr.mxu0 0.0
  %v347 = vand.u32 %v36, 4294901760
  %v348 = vsub.f32 %v36, %v347
  %349 = vmatpush1.msra.mxu0 %v348
  %350 = vmatprep.subr.mxu0 0.0
  %v351 = vand.u32 %v37, 4294901760
  %v352 = vsub.f32 %v37, %v351
  %353 = vmatpush1.msra.mxu0 %v352
  %354 = vmatprep.subr.mxu0 0.0
  %v355 = vand.u32 %v38, 4294901760
  %v356 = vsub.f32 %v38, %v355
  %357 = vmatpush1.msra.mxu0 %v356
  %358 = vmatprep.subr.mxu0 0.0
  %v359 = vand.u32 %v39, 4294901760
  %v360 = vsub.f32 %v39, %v359
  %361 = vmatpush1.msra.mxu0 %v360
  %362 = vmatprep.subr.mxu0 0.0
  %363 = vmatpush1.msra.mxu0 0.0
  %364 = vmatprep.subr.mxu0 0.0
  %365 = vmatpush1.msra.mxu0 0.0
  %366 = vmatprep.subr.mxu0 0.0
  %367 = vmatpush1.msra.mxu0 0.0
  %368 = vmatprep.subr.mxu0 0.0
  %369 = vmatpush1.msra.mxu0 0.0
  %370 = vmatprep.subr.mxu0 0.0
  %371 = vmatpush1.msra.mxu0 0.0
  %372 = vmatprep.subr.mxu0 0.0
  %373 = vmatpush1.msra.mxu0 0.0
  %374 = vmatprep.subr.mxu0 0.0
  %375 = vmatpush1.msra.mxu0 0.0
  %376 = vmatprep.subr.mxu0 0.0
  %377 = vmatpush1.msra.mxu0 0.0
  %378 = vmatprep.subr.mxu0 0.0
  %379 = vmatpush1.msra.mxu0 0.0
  %380 = vmatprep.subr.mxu0 0.0
  %381 = vmatpush1.msra.mxu0 0.0
  %382 = vmatprep.subr.mxu0 0.0
  %383 = vmatpush1.msra.mxu0 0.0
  %384 = vmatprep.subr.mxu0 0.0
  %385 = vmatpush1.msra.mxu0 0.0
  %386 = vmatprep.subr.mxu0 0.0
  %387 = vmatpush1.msra.mxu0 0.0
  %388 = vmatprep.subr.mxu0 0.0
  %389 = vmatpush1.msra.mxu0 0.0
  %390 = vmatprep.subr.mxu0 0.0
  %391 = vmatpush1.msra.mxu0 0.0
  %392 = vmatprep.subr.mxu0 0.0
  %393 = vmatpush1.msra.mxu0 0.0
  %394 = vmatprep.mubr.f32.mxu0 0.0
  %v395 = vand.u32 %v22, 4294901760
  %v396 = vsub.f32 %v22, %v395
  %397 = vmatmul.mubr.f32.gmra.mrb[0].mxu0 %v396
  %v398 = vpop.f32.mrb[0].mxu0
  %v399 = vadd.f32 %v289, %v398
  %v400 = vpop.f32.mrb[0].mxu0
  %401 = vmatprep.mubr.f32.mxu0 0.0
  %v402 = vand.u32 %v23, 4294901760
  %v403 = vsub.f32 %v23, %v402
  %404 = vmatmul.mubr.f32.gmra.mrb[0].mxu0 %v403
  %v405 = vpop.f32.mrb[0].mxu0
  %v406 = vadd.f32 %v295, %v405
  %v407 = vpop.f32.mrb[0].mxu0
  %408 = vdwg.mxu0
  %409 = vmatprep.subr.mxu0 0.0
  %v410 = vand.u32 %v24, 4294901760
  %411 = vmatpush1.msra.mxu0 %v410
  %412 = vmatprep.subr.mxu0 0.0
  %v413 = vand.u32 %v25, 4294901760
  %414 = vmatpush1.msra.mxu0 %v413
  %415 = vmatprep.subr.mxu0 0.0
  %v416 = vand.u32 %v26, 4294901760
  %417 = vmatpush1.msra.mxu0 %v416
  %418 = vmatprep.subr.mxu0 0.0
  %v419 = vand.u32 %v27, 4294901760
  %420 = vmatpush1.msra.mxu0 %v419
  %421 = vmatprep.subr.mxu0 0.0
  %v422 = vand.u32 %v28, 4294901760
  %423 = vmatpush1.msra.mxu0 %v422
  %424 = vmatprep.subr.mxu0 0.0
  %v425 = vand.u32 %v29, 4294901760
  %426 = vmatpush1.msra.mxu0 %v425
  %427 = vmatprep.subr.mxu0 0.0
  %v428 = vand.u32 %v30, 4294901760
  %429 = vmatpush1.msra.mxu0 %v428
  %430 = vmatprep.subr.mxu0 0.0
  %v431 = vand.u32 %v31, 4294901760
  %432 = vmatpush1.msra.mxu0 %v431
  %433 = vmatprep.subr.mxu0 0.0
  %v434 = vand.u32 %v32, 4294901760
  %435 = vmatpush1.msra.mxu0 %v434
  %436 = vmatprep.subr.mxu0 0.0
  %v437 = vand.u32 %v33, 4294901760
  %438 = vmatpush1.msra.mxu0 %v437
  %439 = vmatprep.subr.mxu0 0.0
  %v440 = vand.u32 %v34, 4294901760
  %441 = vmatpush1.msra.mxu0 %v440
  %442 = vmatprep.subr.mxu0 0.0
  %v443 = vand.u32 %v35, 4294901760
  %444 = vmatpush1.msra.mxu0 %v443
  %445 = vmatprep.subr.mxu0 0.0
  %v446 = vand.u32 %v36, 4294901760
  %447 = vmatpush1.msra.mxu0 %v446
  %448 = vmatprep.subr.mxu0 0.0
  %v449 = vand.u32 %v37, 4294901760
  %450 = vmatpush1.msra.mxu0 %v449
  %451 = vmatprep.subr.mxu0 0.0
  %v452 = vand.u32 %v38, 4294901760
  %453 = vmatpush1.msra.mxu0 %v452
  %454 = vmatprep.subr.mxu0 0.0
  %v455 = vand.u32 %v39, 4294901760
  %456 = vmatpush1.msra.mxu0 %v455
  %457 = vmatprep.subr.mxu0 0.0
  %458 = vmatpush1.msra.mxu0 0.0
  %459 = vmatprep.subr.mxu0 0.0
  %460 = vmatpush1.msra.mxu0 0.0
  %461 = vmatprep.subr.mxu0 0.0
  %462 = vmatpush1.msra.mxu0 0.0
  %463 = vmatprep.subr.mxu0 0.0
  %464 = vmatpush1.msra.mxu0 0.0
  %465 = vmatprep.subr.mxu0 0.0
  %466 = vmatpush1.msra.mxu0 0.0
  %467 = vmatprep.subr.mxu0 0.0
  %468 = vmatpush1.msra.mxu0 0.0
  %469 = vmatprep.subr.mxu0 0.0
  %470 = vmatpush1.msra.mxu0 0.0
  %471 = vmatprep.subr.mxu0 0.0
  %472 = vmatpush1.msra.mxu0 0.0
  %473 = vmatprep.subr.mxu0 0.0
  %474 = vmatpush1.msra.mxu0 0.0
  %475 = vmatprep.subr.mxu0 0.0
  %476 = vmatpush1.msra.mxu0 0.0
  %477 = vmatprep.subr.mxu0 0.0
  %478 = vmatpush1.msra.mxu0 0.0
  %479 = vmatprep.subr.mxu0 0.0
  %480 = vmatpush1.msra.mxu0 0.0
  %481 = vmatprep.subr.mxu0 0.0
  %482 = vmatpush1.msra.mxu0 0.0
  %483 = vmatprep.subr.mxu0 0.0
  %484 = vmatpush1.msra.mxu0 0.0
  %485 = vmatprep.subr.mxu0 0.0
  %486 = vmatpush1.msra.mxu0 0.0
  %487 = vmatprep.subr.mxu0 0.0
  %488 = vmatpush1.msra.mxu0 0.0
  %489 = vmatprep.mubr.f32.mxu0 0.0
  %v490 = vand.u32 %v22, 4294901760
  %v491 = vsub.f32 %v22, %v490
  %v492 = vand.u32 %v491, 4294901760
  %493 = vmatmul.mubr.f32.gmra.mrb[0].mxu0 %v492
  %v494 = vpop.f32.mrb[0].mxu0
  %v495 = vadd.f32 %v399, %v494
  %v496 = vpop.f32.mrb[0].mxu0
  %497 = vmatprep.mubr.f32.mxu0 0.0
  %v498 = vand.u32 %v23, 4294901760
  %v499 = vsub.f32 %v23, %v498
  %v500 = vand.u32 %v499, 4294901760
  %501 = vmatmul.mubr.f32.gmra.mrb[0].mxu0 %v500
  %v502 = vpop.f32.mrb[0].mxu0
  %v503 = vadd.f32 %v406, %v502
  %v504 = vpop.f32.mrb[0].mxu0
  %505 = vdwg.mxu0
  %506 = vmatprep.subr.mxu0 0.0
  %v507 = vand.u32 %v24, 4294901760
  %v508 = vsub.f32 %v24, %v507
  %v509 = vand.u32 %v508, 4294901760
  %510 = vmatpush1.msra.mxu0 %v509
  %511 = vmatprep.subr.mxu0 0.0
  %v512 = vand.u32 %v25, 4294901760
  %v513 = vsub.f32 %v25, %v512
  %v514 = vand.u32 %v513, 4294901760
  %515 = vmatpush1.msra.mxu0 %v514
  %516 = vmatprep.subr.mxu0 0.0
  %v517 = vand.u32 %v26, 4294901760
  %v518 = vsub.f32 %v26, %v517
  %v519 = vand.u32 %v518, 4294901760
  %520 = vmatpush1.msra.mxu0 %v519
  %521 = vmatprep.subr.mxu0 0.0
  %v522 = vand.u32 %v27, 4294901760
  %v523 = vsub.f32 %v27, %v522
  %v524 = vand.u32 %v523, 4294901760
  %525 = vmatpush1.msra.mxu0 %v524
  %526 = vmatprep.subr.mxu0 0.0
  %v527 = vand.u32 %v28, 4294901760
  %v528 = vsub.f32 %v28, %v527
  %v529 = vand.u32 %v528, 4294901760
  %530 = vmatpush1.msra.mxu0 %v529
  %531 = vmatprep.subr.mxu0 0.0
  %v532 = vand.u32 %v29, 4294901760
  %v533 = vsub.f32 %v29, %v532
  %v534 = vand.u32 %v533, 4294901760
  %535 = vmatpush1.msra.mxu0 %v534
  %536 = vmatprep.subr.mxu0 0.0
  %v537 = vand.u32 %v30, 4294901760
  %v538 = vsub.f32 %v30, %v537
  %v539 = vand.u32 %v538, 4294901760
  %540 = vmatpush1.msra.mxu0 %v539
  %541 = vmatprep.subr.mxu0 0.0
  %v542 = vand.u32 %v31, 4294901760
  %v543 = vsub.f32 %v31, %v542
  %v544 = vand.u32 %v543, 4294901760
  %545 = vmatpush1.msra.mxu0 %v544
  %546 = vmatprep.subr.mxu0 0.0
  %v547 = vand.u32 %v32, 4294901760
  %v548 = vsub.f32 %v32, %v547
  %v549 = vand.u32 %v548, 4294901760
  %550 = vmatpush1.msra.mxu0 %v549
  %551 = vmatprep.subr.mxu0 0.0
  %v552 = vand.u32 %v33, 4294901760
  %v553 = vsub.f32 %v33, %v552
  %v554 = vand.u32 %v553, 4294901760
  %555 = vmatpush1.msra.mxu0 %v554
  %556 = vmatprep.subr.mxu0 0.0
  %v557 = vand.u32 %v34, 4294901760
  %v558 = vsub.f32 %v34, %v557
  %v559 = vand.u32 %v558, 4294901760
  %560 = vmatpush1.msra.mxu0 %v559
  %561 = vmatprep.subr.mxu0 0.0
  %v562 = vand.u32 %v35, 4294901760
  %v563 = vsub.f32 %v35, %v562
  %v564 = vand.u32 %v563, 4294901760
  %565 = vmatpush1.msra.mxu0 %v564
  %566 = vmatprep.subr.mxu0 0.0
  %v567 = vand.u32 %v36, 4294901760
  %v568 = vsub.f32 %v36, %v567
  %v569 = vand.u32 %v568, 4294901760
  %570 = vmatpush1.msra.mxu0 %v569
  %571 = vmatprep.subr.mxu0 0.0
  %v572 = vand.u32 %v37, 4294901760
  %v573 = vsub.f32 %v37, %v572
  %v574 = vand.u32 %v573, 4294901760
  %575 = vmatpush1.msra.mxu0 %v574
  %576 = vmatprep.subr.mxu0 0.0
  %v577 = vand.u32 %v38, 4294901760
  %v578 = vsub.f32 %v38, %v577
  %v579 = vand.u32 %v578, 4294901760
  %580 = vmatpush1.msra.mxu0 %v579
  %581 = vmatprep.subr.mxu0 0.0
  %v582 = vand.u32 %v39, 4294901760
  %v583 = vsub.f32 %v39, %v582
  %v584 = vand.u32 %v583, 4294901760
  %585 = vmatpush1.msra.mxu0 %v584
  %586 = vmatprep.subr.mxu0 0.0
  %587 = vmatpush1.msra.mxu0 0.0
  %588 = vmatprep.subr.mxu0 0.0
  %589 = vmatpush1.msra.mxu0 0.0
  %590 = vmatprep.subr.mxu0 0.0
  %591 = vmatpush1.msra.mxu0 0.0
  %592 = vmatprep.subr.mxu0 0.0
  %593 = vmatpush1.msra.mxu0 0.0
  %594 = vmatprep.subr.mxu0 0.0
  %595 = vmatpush1.msra.mxu0 0.0
  %596 = vmatprep.subr.mxu0 0.0
  %597 = vmatpush1.msra.mxu0 0.0
  %598 = vmatprep.subr.mxu0 0.0
  %599 = vmatpush1.msra.mxu0 0.0
  %600 = vmatprep.subr.mxu0 0.0
  %601 = vmatpush1.msra.mxu0 0.0
  %602 = vmatprep.subr.mxu0 0.0
  %603 = vmatpush1.msra.mxu0 0.0
  %604 = vmatprep.subr.mxu0 0.0
  %605 = vmatpush1.msra.mxu0 0.0
  %606 = vmatprep.subr.mxu0 0.0
  %607 = vmatpush1.msra.mxu0 0.0
  %608 = vmatprep.subr.mxu0 0.0
  %609 = vmatpush1.msra.mxu0 0.0
  %610 = vmatprep.subr.mxu0 0.0
  %611 = vmatpush1.msra.mxu0 0.0
  %612 = vmatprep.subr.mxu0 0.0
  %613 = vmatpush1.msra.mxu0 0.0
  %614 = vmatprep.subr.mxu0 0.0
  %615 = vmatpush1.msra.mxu0 0.0
  %616 = vmatprep.subr.mxu0 0.0
  %617 = vmatpush1.msra.mxu0 0.0
  %618 = vmatprep.mubr.f32.mxu0 0.0
  %v619 = vand.u32 %v22, 4294901760
  %620 = vmatmul.mubr.f32.gmra.mrb[0].mxu0 %v619
  %v621 = vpop.f32.mrb[0].mxu0
  %v622 = vadd.f32 %v495, %v621
  %v623 = vpop.f32.mrb[0].mxu0
  %624 = vmatprep.mubr.f32.mxu0 0.0
  %v625 = vand.u32 %v23, 4294901760
  %626 = vmatmul.mubr.f32.gmra.mrb[0].mxu0 %v625
  %v627 = vpop.f32.mrb[0].mxu0
  %v628 = vadd.f32 %v503, %v627
  %v629 = vpop.f32.mrb[0].mxu0
  %630 = vdwg.mxu0
  %631 = vmatprep.subr.mxu0 0.0
  %v632 = vand.u32 %v24, 4294901760
  %633 = vmatpush1.msra.mxu0 %v632
  %634 = vmatprep.subr.mxu0 0.0
  %v635 = vand.u32 %v25, 4294901760
  %636 = vmatpush1.msra.mxu0 %v635
  %637 = vmatprep.subr.mxu0 0.0
  %v638 = vand.u32 %v26, 4294901760
  %639 = vmatpush1.msra.mxu0 %v638
  %640 = vmatprep.subr.mxu0 0.0
  %v641 = vand.u32 %v27, 4294901760
  %642 = vmatpush1.msra.mxu0 %v641
  %643 = vmatprep.subr.mxu0 0.0
  %v644 = vand.u32 %v28, 4294901760
  %645 = vmatpush1.msra.mxu0 %v644
  %646 = vmatprep.subr.mxu0 0.0
  %v647 = vand.u32 %v29, 4294901760
  %648 = vmatpush1.msra.mxu0 %v647
  %649 = vmatprep.subr.mxu0 0.0
  %v650 = vand.u32 %v30, 4294901760
  %651 = vmatpush1.msra.mxu0 %v650
  %652 = vmatprep.subr.mxu0 0.0
  %v653 = vand.u32 %v31, 4294901760
  %654 = vmatpush1.msra.mxu0 %v653
  %655 = vmatprep.subr.mxu0 0.0
  %v656 = vand.u32 %v32, 4294901760
  %657 = vmatpush1.msra.mxu0 %v656
  %658 = vmatprep.subr.mxu0 0.0
  %v659 = vand.u32 %v33, 4294901760
  %660 = vmatpush1.msra.mxu0 %v659
  %661 = vmatprep.subr.mxu0 0.0
  %v662 = vand.u32 %v34, 4294901760
  %663 = vmatpush1.msra.mxu0 %v662
  %664 = vmatprep.subr.mxu0 0.0
  %v665 = vand.u32 %v35, 4294901760
  %666 = vmatpush1.msra.mxu0 %v665
  %667 = vmatprep.subr.mxu0 0.0
  %v668 = vand.u32 %v36, 4294901760
  %669 = vmatpush1.msra.mxu0 %v668
  %670 = vmatprep.subr.mxu0 0.0
  %v671 = vand.u32 %v37, 4294901760
  %672 = vmatpush1.msra.mxu0 %v671
  %673 = vmatprep.subr.mxu0 0.0
  %v674 = vand.u32 %v38, 4294901760
  %675 = vmatpush1.msra.mxu0 %v674
  %676 = vmatprep.subr.mxu0 0.0
  %v677 = vand.u32 %v39, 4294901760
  %678 = vmatpush1.msra.mxu0 %v677
  %679 = vmatprep.subr.mxu0 0.0
  %680 = vmatpush1.msra.mxu0 0.0
  %681 = vmatprep.subr.mxu0 0.0
  %682 = vmatpush1.msra.mxu0 0.0
  %683 = vmatprep.subr.mxu0 0.0
  %684 = vmatpush1.msra.mxu0 0.0
  %685 = vmatprep.subr.mxu0 0.0
  %686 = vmatpush1.msra.mxu0 0.0
  %687 = vmatprep.subr.mxu0 0.0
  %688 = vmatpush1.msra.mxu0 0.0
  %689 = vmatprep.subr.mxu0 0.0
  %690 = vmatpush1.msra.mxu0 0.0
  %691 = vmatprep.subr.mxu0 0.0
  %692 = vmatpush1.msra.mxu0 0.0
  %693 = vmatprep.subr.mxu0 0.0
  %694 = vmatpush1.msra.mxu0 0.0
  %695 = vmatprep.subr.mxu0 0.0
  %696 = vmatpush1.msra.mxu0 0.0
  %697 = vmatprep.subr.mxu0 0.0
  %698 = vmatpush1.msra.mxu0 0.0
  %699 = vmatprep.subr.mxu0 0.0
  %700 = vmatpush1.msra.mxu0 0.0
  %701 = vmatprep.subr.mxu0 0.0
  %702 = vmatpush1.msra.mxu0 0.0
  %703 = vmatprep.subr.mxu0 0.0
  %704 = vmatpush1.msra.mxu0 0.0
  %705 = vmatprep.subr.mxu0 0.0
  %706 = vmatpush1.msra.mxu0 0.0
  %707 = vmatprep.subr.mxu0 0.0
  %708 = vmatpush1.msra.mxu0 0.0
  %709 = vmatprep.subr.mxu0 0.0
  %710 = vmatpush1.msra.mxu0 0.0
  %711 = vmatprep.mubr.f32.mxu0 0.0
  %v712 = vand.u32 %v22, 4294901760
  %713 = vmatmul.mubr.f32.gmra.mrb[0].mxu0 %v712
  %v714 = vpop.f32.mrb[0].mxu0
  %v715 = vadd.f32 %v622, %v714
  %v716 = vpop.f32.mrb[0].mxu0
  %717 = vmatprep.mubr.f32.mxu0 0.0
  %v718 = vand.u32 %v23, 4294901760
  %719 = vmatmul.mubr.f32.gmra.mrb[0].mxu0 %v718
  %v720 = vpop.f32.mrb[0].mxu0
  %v721 = vadd.f32 %v628, %v720
  %v722 = vpop.f32.mrb[0].mxu0
  %723 = vdwg.mxu0
  %v724 = vlaneseq
  %v725 = vshrl.u32 %v724, 7
  %v726 = vadd.s32 %v725, 8
  %s727 = smul.u32 0, 16
  %v728 = vstv %s727
  %v729 = vadd.s32 %v725, %v728
  %v730 = vadd.s32 %v726, %v728
  %v731 = vlaneseq
  %v732 = vand.u32 %v731, 127
  %s733 = smul.u32 0, 16
  %v734 = vstv %s733
  %v735 = vadd.s32 %v732, %v734
  %v736 = vadd.s32 %v729, 8
  %v737 = vadd.s32 %v730, 8
  %vm738 = vcmp.ge.s32.totalorder %v736, 16
  %vm739 = vcmp.ge.s32.totalorder %v737, 16
  %v740 = vsub.s32 %v736, 16
  %v741 = vsub.s32 %v737, 16
  %v742 = vsel %vm738, %v740, %v736
  %v743 = vsel %vm739, %v741, %v737
  %v744 = vld [vmem:[#allocation4] sm:$0xff]
  %v745 = vld [vmem:[#allocation4 + $0x8] sm:$0xff]
  %vm746 = vcmp.eq.s32.totalorder %v735, %v742
  %vm747 = vcmp.eq.s32.totalorder %v735, %v743
  %v748 = vsel %vm746, %v715, 0.0
  %v749 = vsel %vm747, %v721, 0.0
  %vm750 = vcmask 130048
  %v751 = vsel %vm750, %v748, 0.0
  %752 = vadd.xlane.f32.xlu0 %v751
  %v753 = vpop.xlane.xlu0 %752
  %v754 = vsel %vm750, %v749, 0.0
  %755 = vadd.xlane.f32.xlu0 %v754
  %v756 = vpop.xlane.xlu0 %755
  %v757 = vadd.f32 %v744, %v753
  %v758 = vadd.f32 %v745, %v756
  %vm759 = vcmask 7168
  %760 = vst.msk [vmem:[#allocation4] sm:$0xff] %vm759, %v757
  %761 = vst.msk [vmem:[#allocation4 + $0x8] sm:$0xff] %vm759, %v758
  %vm762 = vcmp.eq.s32.totalorder %v729, %v735
  %vm763 = vcmp.eq.s32.totalorder %v730, %v735
  %v764 = vsel %vm762, -inf, %v715
  %v765 = vsel %vm763, -inf, %v721
  %v766 = vld [vmem:[#allocation2] sm:$0xff]
  %v767 = vld [vmem:[#allocation2 + $0x8] sm:$0xff]
  %v768 = vsel %vm750, %v764, -inf
  %769 = vmax.xlane.f32.xlu0 %v768
  %v770 = vpop.xlane.xlu0 %769
  %v771 = vsel %vm750, %v765, -inf
  %772 = vmax.xlane.f32.xlu0 %v771
  %v773 = vpop.xlane.xlu0 %772
  %v774 = vmax.f32 %v766, %v770
  %v775 = vmax.f32 %v767, %v773
  %v776 = vsub.f32 %v766, %v774
  %v777 = vsub.f32 %v767, %v775
  %v778 = vmul.f32 %v776, 1.442695
  %v779 = vpow.pop %v778
  %v780 = vmul.f32 %v777, 1.442695
  %v781 = vpow.pop %v780
  %v782 = vld [vmem:[#allocation3] sm:$0xff]
  %v783 = vld [vmem:[#allocation3 + $0x8] sm:$0xff]
  %v784 = vmul.f32 %v779, %v782
  %v785 = vmul.f32 %v781, %v783
  %787 = vset.pattern.permute.xlu0 0
  %788 = vperm.xlu0 %787, %v774
  %v789 = vpop.permute.xlu0 %788
  %792 = vset.pattern.permute.xlu0 0
  %793 = vperm.xlu0 %792, %v775
  %v794 = vpop.permute.xlu0 %793
  %v796 = vsub.f32 %v764, %v789
  %v797 = vsub.f32 %v765, %v794
  %v798 = vmul.f32 %v796, 1.442695
  %v799 = vpow.pop %v798
  %v800 = vmul.f32 %v797, 1.442695
  %v801 = vpow.pop %v800
  %v802 = vsel %vm750, %v799, 0.0
  %803 = vadd.xlane.f32.xlu0 %v802
  %v804 = vpop.xlane.xlu0 %803
  %v805 = vsel %vm750, %v801, 0.0
  %806 = vadd.xlane.f32.xlu0 %v805
  %v807 = vpop.xlane.xlu0 %806
  %v808 = vadd.f32 %v784, %v804
  %v809 = vadd.f32 %v785, %v807
  %810 = vst.msk [vmem:[#allocation3] sm:$0xff] %vm759, %v808
  %811 = vst.msk [vmem:[#allocation3 + $0x8] sm:$0xff] %vm759, %v809
  %812 = vst.msk [vmem:[#allocation2] sm:$0xff] %vm759, %v774
  %813 = vst.msk [vmem:[#allocation2 + $0x8] sm:$0xff] %vm759, %v775
  // Predicated region
  $region14: #{tpu_custom_call.1} parent=0 // pred_check
    %p814 = pneg %p11
  $region15: #{tpu_custom_call.1} parent=0 // pred_check_branch
    %816 = sbr.rel (%p814) target = $region17
  $region16: #{tpu_custom_call.1} parent=0 // pred_region
    %v817 = vld [vmem:[#allocation2] sm:$0xff]
    %v818 = vld [vmem:[#allocation2 + $0x8] sm:$0xff]
    %v819 = vld [vmem:[#allocation3] sm:$0xff]
    %v820 = vld [vmem:[#allocation3 + $0x8] sm:$0xff]
    %v821 = vlog2.pop %v819
    %v822 = vmul.f32 %v821, 0.6931472
    %v823 = vlog2.pop %v820
    %v824 = vmul.f32 %v823, 0.6931472
    %v825 = vadd.f32 %v817, %v822
    %v826 = vadd.f32 %v818, %v824
    %v827 = vld [vmem:[#allocation4] sm:$0xff]
    %v828 = vld [vmem:[#allocation4 + $0x8] sm:$0xff]
    %v829 = vsub.f32 %v825, %v827
    %v830 = vsub.f32 %v826, %v828
    %831 = vst.msk [vmem:[%s2] sm:$0xff] %vm759, %v829
    %832 = vst.msk [vmem:[%s2 + $0x8] sm:$0xff] %vm759, %v830
  $region17: #{tpu_custom_call.1} parent=0 // pred_fallthru
    _
  // Predicated region
  $region18: #{tpu_custom_call.1} parent=0 // pred_check
    _
  $region19: #{tpu_custom_call.1} parent=0 // pred_check_branch
    %834 = sbr.rel (0) target = $region21
  $region20: #{tpu_custom_call.1} parent=0 // pred_region
    _
  $region21: #{tpu_custom_call.1} parent=0 // pred_fallthru
    _
  // Predicated region
  $region22: #{tpu_custom_call.1} parent=0 // pred_check
    _
  $region23: #{tpu_custom_call.1} parent=0 // pred_check_branch
    %836 = sbr.rel (0) target = $region25
  $region24: #{tpu_custom_call.1} parent=0 // pred_region
    _
  $region25: #{tpu_custom_call.1} parent=0 // pred_fallthru
    _

</llo_original>
